<compile_context>
chip_gen: v7x
topology: tpu7x:2x2x1
jax: 0.10.0
libtpu: 0.0.40
codegen_flags: <defaults>
</compile_context>

<pallas_src>
import jax
import jax.numpy as jnp
from jax.experimental import pallas as pl
from jax.experimental.pallas import tpu as pltpu


# ----------------------------------------------------------------------------
# Zero-copy path: aliased no-op Pallas kernel (the real "unsqueeze").
# ----------------------------------------------------------------------------
def _alias_kernel(x_hbm_ref, o_hbm_ref, flag_ref):
    # Input 0 is aliased to output 0 and both live in their original memory
    # space (pl.ANY), so the output bytes are already in place — there is
    # nothing to move.  The SMEM store below is a trivially cheap scalar op
    # that keeps the kernel body non-empty.
    del x_hbm_ref, o_hbm_ref
    flag_ref[0] = jnp.int32(0)


def _aliased_passthrough(x):
    """Pallas entry point that performs zero data movement (in/out aliased)."""
    return pl.pallas_call(
        _alias_kernel,
        out_shape=jax.ShapeDtypeStruct(x.shape, x.dtype),
        in_specs=[pl.BlockSpec(memory_space=pl.ANY)],
        out_specs=pl.BlockSpec(memory_space=pl.ANY),
        scratch_shapes=[pltpu.SMEM((1,), jnp.int32)],
        input_output_aliases={0: 0},
    )(x)


# ----------------------------------------------------------------------------
# Optional physical-copy path (only if a real copy is required).
# ----------------------------------------------------------------------------
def _copy_kernel(x_ref, o_ref):
    o_ref[...] = x_ref[...]


def _sublane(dtype) -> int:
    """Sublane granularity by packing width: f32 -> 8, bf16 -> 16, i8/fp8 -> 32."""
    itemsize = jnp.dtype(dtype).itemsize
    if itemsize == 1:
        return 32
    if itemsize == 2:
        return 16
    return 8


def _plan_copy_tiles(n: int, dtype):
    """Pick a lane-dense (rows, cols) factorization and a row tile `tm`.

    Returns None if the element count is not a multiple of 128 lanes (the
    caller then falls back to the zero-copy path).
    """
    sub = _sublane(dtype)
    itemsize = jnp.dtype(dtype).itemsize

    cols = None
    for c in (2048, 1024, 512, 256, 128):          # widest lane-dense slab first
        if n % c == 0:
            if cols is None:
                cols = c                            # fallback: widest divisor
            if n // c >= sub:
                cols = c                            # prefer rows >= one sublane group
                break
    if cols is None:
        return None

    rows = n // cols
    # ~2 MiB per block: 4x double-buffered footprint (2 in + 2 out) stays well
    # under v5e's 16 MiB default scoped VMEM and v7x's 64 MiB physical VMEM,
    # while large enough to sit near the HBM roofline and amortize the
    # ~0.35 us per-grid-step overhead.
    target_block_bytes = 2 * 1024 * 1024
    tm = (target_block_bytes // (cols * itemsize)) // sub * sub
    tm = max(sub, tm)
    if tm >= rows:
        tm = rows                                   # full extent (always legal)
    return rows, cols, tm


def _lane_dense_copy(x2, tm: int):
    rows, cols = x2.shape
    grid = (pl.cdiv(rows, tm),)                     # ragged last block is fine
    nbytes = int(x2.size) * jnp.dtype(x2.dtype).itemsize
    return pl.pallas_call(
        _copy_kernel,
        out_shape=jax.ShapeDtypeStruct((rows, cols), x2.dtype),
        grid=grid,
        in_specs=[pl.BlockSpec((tm, cols), lambda i: (i, 0))],
        out_specs=pl.BlockSpec((tm, cols), lambda i: (i, 0)),
        compiler_params=pltpu.CompilerParams(
            dimension_semantics=("parallel",),       # v7x: shard steps over both TCs
            vmem_limit_bytes=32 * 1024 * 1024,
        ),
        cost_estimate=pl.CostEstimate(
            flops=0, transcendentals=0, bytes_accessed=2 * nbytes
        ),
    )(x2)


# ----------------------------------------------------------------------------
# Unsqueeze forward
# ----------------------------------------------------------------------------
def unsqueeze_forward(x, dim: int, *, force_copy: bool = False):
    """Equivalent of torch.unsqueeze(x, dim).

    Default path: metadata-only reshape + aliased no-op Pallas kernel (zero
    data movement).  force_copy=True runs an optimized lane-dense copy kernel
    instead (for cases where a fresh physical buffer is required).
    """
    nd = x.ndim
    # torch semantics: dim in [-(nd+1), nd], negatives relative to output rank.
    if dim < 0:
        dim = dim + nd + 1
    assert 0 <= dim <= nd, f"dim {dim} out of range for rank-{nd} input"
    out_shape = x.shape[:dim] + (1,) + x.shape[dim:]

    n = x.size
    if n == 0:
        # Degenerate empty tensor: nothing to do at all.
        return jnp.reshape(x, out_shape)

    if force_copy:
        plan = _plan_copy_tiles(n, x.dtype)
        if plan is not None:
            rows, cols, tm = plan
            y2 = _lane_dense_copy(jnp.reshape(x, (rows, cols)), tm)
            return jnp.reshape(y2, out_shape)
        # TODO(synk): element counts not divisible by 128 lanes fall back to
        # the zero-copy path instead of a masked-store copy kernel.

    # Zero-copy path: free metadata reshape, then aliased no-op Pallas call.
    y = jnp.reshape(x, out_shape)
    return _aliased_passthrough(y)


# ----------------------------------------------------------------------------
# Pure-JAX reference for correctness checking
# ----------------------------------------------------------------------------
def unsqueeze_reference(x, dim: int):
    return jnp.expand_dims(x, dim)


if __name__ == "__main__":
    key = jax.random.PRNGKey(0)

    # Small deterministic input: (batch=2, channels=4, H=16, W=16).
    x = jax.random.normal(key, (2, 4, 16, 16), dtype=jnp.float32)

    # dim=1 via the zero-copy aliased path: (2,4,16,16) -> (2,1,4,16,16).
    y = jax.block_until_ready(unsqueeze_forward(x, 1))
    assert y.shape == (2, 1, 4, 16, 16), y.shape
    assert y.dtype == x.dtype
    assert jnp.array_equal(y, unsqueeze_reference(x, 1)), "mismatch (dim=1)"

    # Negative dim (torch allows dim in [-(nd+1), nd]).
    y_neg = jax.block_until_ready(unsqueeze_forward(x, -1))
    assert y_neg.shape == (2, 4, 16, 16, 1), y_neg.shape
    assert jnp.array_equal(y_neg, unsqueeze_reference(x, -1)), "mismatch (dim=-1)"

    # Optimized physical-copy path (kept for when a real copy is required).
    y_copy = jax.block_until_ready(unsqueeze_forward(x, 2, force_copy=True))
    assert y_copy.shape == (2, 4, 1, 16, 16), y_copy.shape
    assert jnp.array_equal(y_copy, unsqueeze_reference(x, 2)), "mismatch (copy path)"

    print("KERNEL_OK")
</pallas_src>

<mosaic_0001>
module attributes {stable_mosaic.version = 11 : i64} {
  func.func @_alias_kernel(%arg0: memref<2x1x4x16x16xf32, #tpu.memory_space<any>>, %arg1: memref<2x1x4x16x16xf32, #tpu.memory_space<any>>, %arg2: memref<1xi32, #tpu.memory_space<smem>>) attributes {dimension_semantics = [], scalar_prefetch = 0 : i64, scratch_operands = 1 : i64, tpu.core_type = #tpu.core_type<tc>} {
    %c0_i32 = arith.constant 0 : i32
    %c0 = arith.constant 0 : index
    %0 = memref.load %arg2[%c0] : memref<1xi32, #tpu.memory_space<smem>>
    memref.store %c0_i32, %arg2[%c0] : memref<1xi32, #tpu.memory_space<smem>>
    return
  }
}

</mosaic_0001>

<llo_original>
// kernel: tpu_custom_call.1
$region0: #{tpu_custom_call.1}
  #allocation0 [shape = 'u32[]', space=smem, size = 0x4, offset = 0x4, fixed_abs, tag = 'smem constant byte address 0x4 - core index']
  #allocation1 [shape = 'u32[144,128]{1,0:T(1,128)}', space=vmem, size = 0x12000, scoped, tag = 'internal scratch']
  #allocation2 [shape = 's32[1]{0:T(128)}', space=smem, size = 0x200, scoped, tag = 'scratch operand']
  %s0 = inlined_call_operand.hbm [shape: f32[2,1,4,16,16], index: 0, kind: input, shape index: {}, may-alias: {0,1}]
  %s1 = inlined_call_operand.hbm [shape: f32[2,1,4,16,16], index: 1, kind: output, shape index: {}, may-alias: {0,1}]
  %s2 = sld [smem:[#allocation0]]
  $region2: #{tpu_custom_call.1} parent=0
    _
  %s4 = ssub.s32 1, %s2
  %s5 = scalar_select 0, %s4, %s2
  %s6 = scalar_lea.smem [#allocation2], 0
  %7 = sst [smem:[%s6]] 0

</llo_original>
